<compile_context>
chip_gen: v7x
topology: tpu7x:2x2x1
jax: 0.10.0
libtpu: 0.0.40
codegen_flags: <defaults>
</compile_context>

<pallas_src>
import jax
import jax.numpy as jnp
from jax import lax
from jax.experimental import pallas as pl
from jax.experimental.pallas import tpu as pltpu


def _vmem_budget_bytes():
    """Generation-aware VMEM cap; leave ~25% headroom for compiler scratch."""
    try:
        cap = int(pltpu.get_tpu_info().vmem_capacity_bytes)
    except Exception:
        cap = 64 * 1024 * 1024            # conservative (v7x-sized) fallback
    return (cap * 3) // 4


def _choose_m_tile(M1, down):
    """Tile the im2col M (= H*W) axis.  No halo is needed because the 3x3 window
    is already folded into the K (lane) dimension of the panel."""
    if M1 <= 4096:
        return M1, (M1 // 4 if down else 1), 1
    for tm in (4096, 2048, 1024, 512, 256, 128, 64):
        if M1 % tm == 0:
            return tm, (tm // 4 if down else 1), M1 // tm
    return M1, (M1 // 4 if down else 1), 1


# ---------------------------------------------------------------------------
# Fused Cell kernel.  One grid step = (batch index, M-tile index).
#   branch 1 (stride 1): out1 = s_skip1 * skip(x) + s_conv1 * relu(conv3x3(x))
#   branch 2 (stride 2): out2 = s_skip2 * (x[::2,::2] @ Wskip) + s_conv2 * relu(conv3x3/s2(x))
# Each branch is ONE bf16 MXU matmul over its im2col panel (K = 9*C_in) against a
# fused weight [W_conv | W_skip@center] -> f32 accumulation -> VPU combine -> bf16.
# ---------------------------------------------------------------------------
def _make_cell_kernel(TM, TM2, C1, C2, down):
    def kernel(*refs):
        if down:
            scal_ref, p1_ref, w1_ref, p2_ref, w2_ref, o1_ref, o2_ref = refs
        else:
            scal_ref, p1_ref, w1_ref, o1_ref = refs

        # ----- stride-1 MixedOp: conv taps and (center-tap) skip in one matmul -----
        fused1 = jnp.dot(p1_ref[0], w1_ref[...],
                         preferred_element_type=jnp.float32)        # (TM, 2*C1) f32
        mix1 = (scal_ref[1] * jnp.maximum(fused1[:, :C1], 0.0)      # conv + ReLU
                + scal_ref[0] * fused1[:, C1:])                     # skip
        o1_ref[...] = mix1.astype(o1_ref.dtype).reshape(1, TM, C1)

        if not down:
            return

        # ----- stride-2 MixedOp (downsample): same structure on the stride-2 panel -----
        fused2 = jnp.dot(p2_ref[0], w2_ref[...],
                         preferred_element_type=jnp.float32)        # (TM2, 2*C2) f32
        mix2 = (scal_ref[3] * jnp.maximum(fused2[:, :C2], 0.0)
                + scal_ref[2] * fused2[:, C2:])
        o2_ref[...] = mix2.astype(o2_ref.dtype).reshape(1, TM2, C2)

    return kernel


def _build_cell_call(N, H, W, C_in, C1, C2, down, out_dtype):
    M1 = H * W
    H2, W2 = H // 2, W // 2
    M2 = H2 * W2 if down else 0
    K = 9 * C_in
    TM, TM2, MT = _choose_m_tile(M1, down)

    kernel = _make_cell_kernel(TM, TM2, C1, C2, down)

    smem_spec = pl.BlockSpec(memory_space=pltpu.MemorySpace.SMEM)    # mixture scalars
    p1_spec = pl.BlockSpec((1, TM, K), lambda n, m: (n, m, 0))
    w1_spec = pl.BlockSpec((K, 2 * C1), lambda n, m: (0, 0))         # grid-invariant
    o1_spec = pl.BlockSpec((1, TM, C1), lambda n, m: (n, m, 0))

    b16, b32 = 2, 4
    ob = jnp.dtype(out_dtype).itemsize
    flops = 2 * N * M1 * K * (2 * C1)
    bytes_accessed = (N * M1 * K * b16 + K * 2 * C1 * b16 + N * M1 * C1 * ob)
    vmem_est = (2 * TM * K * b16 + 2 * TM * C1 * ob + 2 * K * 2 * C1 * b16
                + 3 * TM * 2 * C1 * b32)

    if down:
        p2_spec = pl.BlockSpec((1, TM2, K), lambda n, m: (n, m, 0))
        w2_spec = pl.BlockSpec((K, 2 * C2), lambda n, m: (0, 0))
        o2_spec = pl.BlockSpec((1, TM2, C2), lambda n, m: (n, m, 0))
        in_specs = [smem_spec, p1_spec, w1_spec, p2_spec, w2_spec]
        out_specs = (o1_spec, o2_spec)
        out_shape = (jax.ShapeDtypeStruct((N, M1, C1), out_dtype),
                     jax.ShapeDtypeStruct((N, M2, C2), out_dtype))
        flops += 2 * N * M2 * K * (2 * C2)
        bytes_accessed += N * M2 * K * b16 + K * 2 * C2 * b16 + N * M2 * C2 * ob
        vmem_est += (2 * TM2 * K * b16 + 2 * TM2 * C2 * ob + 2 * K * 2 * C2 * b16
                     + 3 * TM2 * 2 * C2 * b32)
    else:
        in_specs = [smem_spec, p1_spec, w1_spec]
        out_specs = o1_spec
        out_shape = jax.ShapeDtypeStruct((N, M1, C1), out_dtype)

    vmem_limit = int(min(max(4 * vmem_est, 32 * 1024 * 1024), _vmem_budget_bytes()))

    return pl.pallas_call(
        kernel,
        out_shape=out_shape,
        grid=(N, MT),
        in_specs=in_specs,
        out_specs=out_specs,
        compiler_params=pltpu.CompilerParams(
            dimension_semantics=("parallel", "parallel"),
            vmem_limit_bytes=vmem_limit),
        cost_estimate=pl.CostEstimate(flops=flops, transcendentals=0,
                                      bytes_accessed=bytes_accessed),
    )


# ---------------------------------------------------------------------------
# Parameter holders mirroring the PyTorch module structure.
# ---------------------------------------------------------------------------
class MixedOpPallas:
    """Parameter holder for one MixedOp (2 primitives: skip, 3x3 conv + ReLU)."""

    def __init__(self, C_in, C_out, stride=1, width_mult_list=(1.0,), *, key):
        self.C_in, self.C_out, self.stride = C_in, C_out, stride
        self.width_mult_list = list(width_mult_list)
        k_conv, k_skip = jax.random.split(key)
        # HWIO layout; flattening matches the (kh, kw, c_in) panel column ordering.
        self.w_conv = 0.1 * jax.random.normal(k_conv, (3, 3, C_in, C_out), jnp.float32)
        self.identity_skip = (stride == 1 and C_in == C_out)
        if self.identity_skip:
            self.w_skip = jnp.eye(C_in, dtype=jnp.float32)
        else:
            self.w_skip = 0.1 * jax.random.normal(k_skip, (C_in, C_out), jnp.float32)

    def fused_weight(self):
        """[W_conv_flat | W_skip placed at the center-tap rows] -> (9*C_in, 2*C_out) bf16.

        The skip input (x for stride 1, x[::2, ::2] for stride 2) is exactly the
        (kh=1, kw=1) im2col tap, so the skip matmul rides in the same MXU pass.
        """
        K = 9 * self.C_in
        wc = self.w_conv.reshape(K, self.C_out)
        ws = jnp.zeros((K, self.C_out), jnp.float32)
        ws = ws.at[4 * self.C_in:5 * self.C_in, :].set(self.w_skip)
        return jnp.concatenate([wc, ws], axis=1).astype(jnp.bfloat16)

    @staticmethod
    def ratio_score(theta):
        # PyTorch: r_score = theta[theta.argmax()] == max(theta).  The selected
        # width ratio only feeds set_prun_ratio (no-op here).  jit-safe.
        if isinstance(theta, jax.Array):
            return jnp.max(theta).astype(jnp.float32)
        return jnp.float32(1.0)


class CellPallas:
    def __init__(self, C_in, C_out=None, down=True, width_mult_list=(1.0,),
                 out_dtype=jnp.bfloat16, *, key):
        if C_out is None:
            C_out = C_in
        self._C_in, self._C_out, self._down = C_in, C_out, down
        self._width_mult_list = list(width_mult_list)
        self._out_dtype = out_dtype
        k1, k2 = jax.random.split(key)
        self._op = MixedOpPallas(C_in, C_out, stride=1,
                                 width_mult_list=width_mult_list, key=k1)
        self._w1f = self._op.fused_weight()                 # (9*C_in, 2*C_out)
        if down:
            self.downsample = MixedOpPallas(C_in, C_in * 2, stride=2,
                                            width_mult_list=width_mult_list, key=k2)
            self._w2f = self.downsample.fused_weight()      # (9*C_in, 4*C_in)
        self._calls = {}

    def _get_call(self, N, H, W):
        key = (N, H, W)
        if key not in self._calls:
            self._calls[key] = _build_cell_call(
                N, H, W, self._C_in, self._C_out,
                2 * self._C_in if self._down else 0, self._down, self._out_dtype)
        return self._calls[key]

    def __call__(self, x_nhwc, fais, thetas):
        N, H, W, C = x_nhwc.shape
        assert C == self._C_in
        assert (self._down and thetas[2] is not None) or \
               (not self._down and thetas[2] is None)

        r0 = MixedOpPallas.ratio_score(thetas[0])
        r1 = MixedOpPallas.ratio_score(thetas[1])
        scal = [fais[0] * r0 * r1, fais[1] * r0 * r1]       # [skip, conv] weights
        if self._down:
            assert H % 2 == 0 and W % 2 == 0
            r2 = MixedOpPallas.ratio_score(thetas[2])
            scal += [fais[0] * r0 * r2, fais[1] * r0 * r2]
        scal = jnp.stack(scal).astype(jnp.float32)

        # im2col with K folded into the lane dimension (K = 9*C_in).  For small
        # C_in this is far cheaper in HBM and MXU lanes than padding channels to
        # 128 per tap (36 vs 128 lanes for C_in=4); XLA fuses pad+slice+concat+cast.
        xpad = jnp.pad(x_nhwc, ((0, 0), (1, 1), (1, 1), (0, 0)))
        taps1 = [xpad[:, kh:kh + H, kw:kw + W, :]
                 for kh in range(3) for kw in range(3)]
        panel1 = jnp.concatenate(taps1, axis=-1).astype(jnp.bfloat16)
        panel1 = panel1.reshape(N, H * W, 9 * C)

        call = self._get_call(N, H, W)
        if self._down:
            H2, W2 = H // 2, W // 2
            taps2 = [xpad[:, kh:kh + 2 * H2:2, kw:kw + 2 * W2:2, :]
                     for kh in range(3) for kw in range(3)]
            panel2 = jnp.concatenate(taps2, axis=-1).astype(jnp.bfloat16)
            panel2 = panel2.reshape(N, H2 * W2, 9 * C)
            o1, o2 = call(scal, panel1, self._w1f, panel2, self._w2f)
            return (o1.reshape(N, H, W, self._C_out),
                    o2.reshape(N, H2, W2, 2 * self._C_in))
        o1 = call(scal, panel1, self._w1f)
        return o1.reshape(N, H, W, self._C_out), None


# ---------------------------------------------------------------------------
# Pure-JAX (f32) reference for verification.
# ---------------------------------------------------------------------------
def _ref_mixedop(x_nhwc, op, fais, thetas):
    r0 = MixedOpPallas.ratio_score(thetas[0])
    r1 = MixedOpPallas.ratio_score(thetas[1])
    conv = lax.conv_general_dilated(
        x_nhwc, op.w_conv, (op.stride, op.stride), ((1, 1), (1, 1)),
        dimension_numbers=('NHWC', 'HWIO', 'NHWC'))
    conv = jnp.maximum(conv, 0.0)
    xs = x_nhwc[:, ::op.stride, ::op.stride, :]
    skip = jnp.einsum('nhwc,cd->nhwd', xs, op.w_skip)
    return (fais[0] * skip + fais[1] * conv) * r0 * r1


if __name__ == "__main__":
    key = jax.random.PRNGKey(0)
    kx, kc, kc2 = jax.random.split(key, 3)

    N, C, H, W = 2, 4, 16, 16
    x_nchw = jax.random.normal(kx, (N, C, H, W), jnp.float32)   # PyTorch-style input
    x_nhwc = jnp.transpose(x_nchw, (0, 2, 3, 1))

    cell = CellPallas(C_in=C, down=True, width_mult_list=(1.0,), key=kc)

    fais = jax.nn.softmax(jnp.array([0.2, 0.8], jnp.float32))   # per-primitive weights
    theta0 = jnp.array([0.9], jnp.float32)
    theta1 = jnp.array([0.8], jnp.float32)
    theta2 = jnp.array([0.7], jnp.float32)

    @jax.jit
    def fwd(x, f, t0, t1, t2):
        return cell(x, f, (t0, t1, t2))

    out, down = fwd(x_nhwc, fais, theta0, theta1, theta2)
    jax.block_until_ready((out, down))

    assert out.shape == (N, H, W, C)
    assert down.shape == (N, H // 2, W // 2, 2 * C)

    out_ref = _ref_mixedop(x_nhwc, cell._op, fais, (theta0, theta1))
    down_ref = _ref_mixedop(x_nhwc, cell.downsample, fais, (theta0, theta2))
    # bf16 MXU operands + bf16 outputs -> relaxed tolerance vs the f32 reference.
    assert jnp.allclose(out.astype(jnp.float32), out_ref, rtol=2e-2, atol=2e-2), \
        float(jnp.max(jnp.abs(out.astype(jnp.float32) - out_ref)))
    assert jnp.allclose(down.astype(jnp.float32), down_ref, rtol=2e-2, atol=2e-2), \
        float(jnp.max(jnp.abs(down.astype(jnp.float32) - down_ref)))

    # Also exercise the no-downsample cell (thetas[2] is None).
    cell_nd = CellPallas(C_in=C, down=False, width_mult_list=(1.0,), key=kc2)
    out_nd, down_nd = jax.jit(
        lambda x, f, t0, t1: cell_nd(x, f, (t0, t1, None)))(x_nhwc, fais, theta0, theta1)
    jax.block_until_ready(out_nd)
    assert down_nd is None
    out_nd_ref = _ref_mixedop(x_nhwc, cell_nd._op, fais, (theta0, theta1))
    assert jnp.allclose(out_nd.astype(jnp.float32), out_nd_ref, rtol=2e-2, atol=2e-2), \
        float(jnp.max(jnp.abs(out_nd.astype(jnp.float32) - out_nd_ref)))

    print("KERNEL_OK")
</pallas_src>

<mosaic_0001>
module attributes {stable_mosaic.version = 11 : i64} {
  func.func @kernel(%arg0: i32, %arg1: i32, %arg2: memref<4xf32, #tpu.memory_space<smem>>, %arg3: memref<1x256x36xbf16, #tpu.memory_space<vmem>>, %arg4: memref<36x8xbf16, #tpu.memory_space<vmem>>, %arg5: memref<1x64x36xbf16, #tpu.memory_space<vmem>>, %arg6: memref<36x16xbf16, #tpu.memory_space<vmem>>, %arg7: memref<1x256x4xbf16, #tpu.memory_space<vmem>>, %arg8: memref<1x64x8xbf16, #tpu.memory_space<vmem>>) attributes {dimension_semantics = [#tpu.dimension_semantics<parallel>, #tpu.dimension_semantics<parallel>], iteration_bounds = array<i64: 2, 1>, scalar_prefetch = 0 : i64, scratch_operands = 0 : i64, tpu.core_type = #tpu.core_type<tc>, window_params = [{transform_indices = @transform_0, window_bounds = array<i64: 4>}, {transform_indices = @transform_1, window_bounds = array<i64: 1, 256, 36>}, {pipeline_mode = #tpu.pipeline_mode<synchronous>, transform_indices = @transform_2, window_bounds = array<i64: 36, 8>}, {transform_indices = @transform_3, window_bounds = array<i64: 1, 64, 36>}, {pipeline_mode = #tpu.pipeline_mode<synchronous>, transform_indices = @transform_4, window_bounds = array<i64: 36, 16>}, {transform_indices = @transform_5, window_bounds = array<i64: 1, 256, 4>}, {transform_indices = @transform_6, window_bounds = array<i64: 1, 64, 8>}]} {
    %c0 = arith.constant 0 : index
    %c0_0 = arith.constant 0 : index
    %c0_1 = arith.constant 0 : index
    %0 = vector.load %arg3[%c0, %c0_0, %c0_1] : memref<1x256x36xbf16, #tpu.memory_space<vmem>>, vector<1x256x36xbf16>
    %1 = vector.shape_cast %0 : vector<1x256x36xbf16> to vector<256x36xbf16>
    %c0_2 = arith.constant 0 : index
    %c0_3 = arith.constant 0 : index
    %2 = vector.load %arg4[%c0_2, %c0_3] : memref<36x8xbf16, #tpu.memory_space<vmem>>, vector<36x8xbf16>
    %cst = arith.constant dense<0.000000e+00> : vector<256x8xf32>
    %3 = tpu.matmul %1, %2, %cst {dimension_numbers = #tpu.dot_dimension_numbers<[1], [0], [0], [1], [0, 0, 1, 1], [], []>} : vector<256x36xbf16>, vector<36x8xbf16>, vector<256x8xf32> -> vector<256x8xf32>
    %c1 = arith.constant 1 : index
    %4 = memref.load %arg2[%c1] : memref<4xf32, #tpu.memory_space<smem>>
    %5 = vector.extract_strided_slice %3 {offsets = [0, 0], sizes = [256, 4], strides = [1, 1]} : vector<256x8xf32> to vector<256x4xf32>
    %cst_4 = arith.constant 0.000000e+00 : f32
    %6 = vector.broadcast %cst_4 : f32 to vector<256x4xf32>
    %7 = arith.maximumf %5, %6 : vector<256x4xf32>
    %8 = vector.broadcast %4 : f32 to vector<256x4xf32>
    %9 = arith.mulf %8, %7 : vector<256x4xf32>
    %c0_5 = arith.constant 0 : index
    %10 = memref.load %arg2[%c0_5] : memref<4xf32, #tpu.memory_space<smem>>
    %11 = vector.extract_strided_slice %3 {offsets = [0, 4], sizes = [256, 4], strides = [1, 1]} : vector<256x8xf32> to vector<256x4xf32>
    %12 = vector.broadcast %10 : f32 to vector<256x4xf32>
    %13 = arith.mulf %12, %11 : vector<256x4xf32>
    %14 = arith.addf %9, %13 : vector<256x4xf32>
    %15 = arith.truncf %14 : vector<256x4xf32> to vector<256x4xbf16>
    %16 = vector.shape_cast %15 : vector<256x4xbf16> to vector<1x256x4xbf16>
    %c0_6 = arith.constant 0 : index
    %c0_7 = arith.constant 0 : index
    %c0_8 = arith.constant 0 : index
    %17 = vector.load %arg7[%c0_6, %c0_7, %c0_8] : memref<1x256x4xbf16, #tpu.memory_space<vmem>>, vector<1x256x4xbf16>
    tpu.vector_store %arg7[%c0_6, %c0_7, %c0_8], %16 {strides = array<i32>} : memref<1x256x4xbf16, #tpu.memory_space<vmem>>, vector<1x256x4xbf16>,
    %c0_9 = arith.constant 0 : index
    %c0_10 = arith.constant 0 : index
    %c0_11 = arith.constant 0 : index
    %18 = vector.load %arg5[%c0_9, %c0_10, %c0_11] : memref<1x64x36xbf16, #tpu.memory_space<vmem>>, vector<1x64x36xbf16>
    %19 = vector.shape_cast %18 : vector<1x64x36xbf16> to vector<64x36xbf16>
    %c0_12 = arith.constant 0 : index
    %c0_13 = arith.constant 0 : index
    %20 = vector.load %arg6[%c0_12, %c0_13] : memref<36x16xbf16, #tpu.memory_space<vmem>>, vector<36x16xbf16>
    %cst_14 = arith.constant dense<0.000000e+00> : vector<64x16xf32>
    %21 = tpu.matmul %19, %20, %cst_14 {dimension_numbers = #tpu.dot_dimension_numbers<[1], [0], [0], [1], [0, 0, 1, 1], [], []>} : vector<64x36xbf16>, vector<36x16xbf16>, vector<64x16xf32> -> vector<64x16xf32>
    %c3 = arith.constant 3 : index
    %22 = memref.load %arg2[%c3] : memref<4xf32, #tpu.memory_space<smem>>
    %23 = vector.extract_strided_slice %21 {offsets = [0, 0], sizes = [64, 8], strides = [1, 1]} : vector<64x16xf32> to vector<64x8xf32>
    %cst_15 = arith.constant 0.000000e+00 : f32
    %24 = vector.broadcast %cst_15 : f32 to vector<64x8xf32>
    %25 = arith.maximumf %23, %24 : vector<64x8xf32>
    %26 = vector.broadcast %22 : f32 to vector<64x8xf32>
    %27 = arith.mulf %26, %25 : vector<64x8xf32>
    %c2 = arith.constant 2 : index
    %28 = memref.load %arg2[%c2] : memref<4xf32, #tpu.memory_space<smem>>
    %29 = vector.extract_strided_slice %21 {offsets = [0, 8], sizes = [64, 8], strides = [1, 1]} : vector<64x16xf32> to vector<64x8xf32>
    %30 = vector.broadcast %28 : f32 to vector<64x8xf32>
    %31 = arith.mulf %30, %29 : vector<64x8xf32>
    %32 = arith.addf %27, %31 : vector<64x8xf32>
    %33 = arith.truncf %32 : vector<64x8xf32> to vector<64x8xbf16>
    %34 = vector.shape_cast %33 : vector<64x8xbf16> to vector<1x64x8xbf16>
    %c0_16 = arith.constant 0 : index
    %c0_17 = arith.constant 0 : index
    %c0_18 = arith.constant 0 : index
    %35 = vector.load %arg8[%c0_16, %c0_17, %c0_18] : memref<1x64x8xbf16, #tpu.memory_space<vmem>>, vector<1x64x8xbf16>
    tpu.vector_store %arg8[%c0_16, %c0_17, %c0_18], %34 {strides = array<i32>} : memref<1x64x8xbf16, #tpu.memory_space<vmem>>, vector<1x64x8xbf16>,
    return
  }
  func.func @transform_0(%arg0: i32, %arg1: i32) -> i32 {
    %c0_i32 = arith.constant 0 : i32
    %c0_i32_0 = arith.constant 0 : i32
    return %c0_i32 : i32
  }
  func.func @transform_1(%arg0: i32, %arg1: i32) -> (i32, i32, i32) {
    %c0_i32 = arith.constant 0 : i32
    %c0_i32_0 = arith.constant 0 : i32
    return %arg0, %arg1, %c0_i32 : i32, i32, i32
  }
  func.func @transform_2(%arg0: i32, %arg1: i32) -> (i32, i32) {
    %c0_i32 = arith.constant 0 : i32
    %c0_i32_0 = arith.constant 0 : i32
    %c0_i32_1 = arith.constant 0 : i32
    return %c0_i32, %c0_i32_0 : i32, i32
  }
  func.func @transform_3(%arg0: i32, %arg1: i32) -> (i32, i32, i32) {
    %c0_i32 = arith.constant 0 : i32
    %c0_i32_0 = arith.constant 0 : i32
    return %arg0, %arg1, %c0_i32 : i32, i32, i32
  }
  func.func @transform_4(%arg0: i32, %arg1: i32) -> (i32, i32) {
    %c0_i32 = arith.constant 0 : i32
    %c0_i32_0 = arith.constant 0 : i32
    %c0_i32_1 = arith.constant 0 : i32
    return %c0_i32, %c0_i32_0 : i32, i32
  }
  func.func @transform_5(%arg0: i32, %arg1: i32) -> (i32, i32, i32) {
    %c0_i32 = arith.constant 0 : i32
    %c0_i32_0 = arith.constant 0 : i32
    return %arg0, %arg1, %c0_i32 : i32, i32, i32
  }
  func.func @transform_6(%arg0: i32, %arg1: i32) -> (i32, i32, i32) {
    %c0_i32 = arith.constant 0 : i32
    %c0_i32_0 = arith.constant 0 : i32
    return %arg0, %arg1, %c0_i32 : i32, i32, i32
  }
}

</mosaic_0001>

<llo_original>
// kernel: fwd.1
$region0: #{fwd.1}
  #allocation0 [shape = 'u32[]', space=smem, size = 0x4, offset = 0x4, fixed_abs, tag = 'smem constant byte address 0x4 - core index']
  #allocation1 [shape = 'u32[144,128]{1,0:T(1,128)}', space=vmem, size = 0x12000, scoped, tag = 'internal scratch']
  %s0 = inlined_call_operand.vmem [shape: f32[4], index: 0, kind: input, shape index: {}]
  %s1 = inlined_call_operand.vmem [shape: bf16[2,256,36], index: 1, kind: input, shape index: {}]
  %s2 = inlined_call_operand.vmem [shape: bf16[36,8], index: 2, kind: input, shape index: {}]
  %s3 = inlined_call_operand.vmem [shape: bf16[2,64,36], index: 3, kind: input, shape index: {}]
  %s4 = inlined_call_operand.vmem [shape: bf16[36,16], index: 4, kind: input, shape index: {}]
  %s5 = inlined_call_operand.vmem [shape: bf16[2,256,4], index: 5, kind: output, shape index: {0}]
  %s6 = inlined_call_operand.hbm [shape: bf16[2,64,8], index: 6, kind: output, shape index: {1}]
  %7 = xla_tuple %s5, %s6
  %s8 = sld [smem:[#allocation0]]
  $region65: #{fwd.1} parent=0
    _
  %s10 = ssub.s32 1, %s8
  %s11 = scalar_select 0, %s10, %s8
  $region1: #{fwd.1} parent=0
    #allocation2 [shape = 'u8[512]{0}', space=smem, size = 0x200, scoped, tag = 'input window, operand 0, single buffered']
    #allocation3 [shape = 's32[2]{0}', space=sflag, size = 0x8, scoped, tag = 'scoped memory for fwd.1']
    #allocation4 [shape = 's32[2]{0}', space=sflag, size = 0x8, scoped, tag = 'scoped memory for fwd.1']
    #allocation5 [shape = 'u8[32768]{0}', space=vmem, size = 0x8000, scoped, tag = 'output window, operand 1']
    %12 = vsyncpa [#allocation4], 0
    %13 = vsyncpa [#allocation3], 0
    %s14 = scalar_lea.sflag [#allocation3], 1
    %15 = vsyncpa %s14, 0
    loop: start=0, step=1, limit=4
    $region2: #{fwd.1} parent=1 // loop_pre_header
      _
    $region3: #{fwd.1} parent=1 // loop_header
      %s17 = sphi 0, %s21
      %p18 = scmp.ge.s32.totalorder %s17, 4
      %s24 = sphi 0, %s36
      %s25 = sphi 0, %s32
      %s26 = sphi 0, %s24
      %s27 = sphi 0, %s25
      %s28 = sphi 0, %s26
      %s29 = sphi 0, %s27
      %s37 = sphi 0, %s37
      %s39 = sphi 0, %s37
      %s40 = sphi 0, %s39
      %s54 = sphi 0, %s40
      %s62 = sphi 0, %s64
      %s65 = sphi 0, %s62
      %s66 = sphi 0, %s65
      %s82 = sphi 0, %s66
      %s86 = sphi 0, %s86
      %s88 = sphi 0, %s86
      %s89 = sphi 0, %s88
      %s103 = sphi 0, %s89
      %s111 = sphi 0, %s113
      %s114 = sphi 0, %s111
      %s115 = sphi 0, %s114
      %s131 = sphi 0, %s115
      %s135 = sphi 0, %s135
      %s137 = sphi 0, %s135
      %s138 = sphi 0, %s137
      %s152 = sphi 0, %s138
      %s160 = sphi 0, %s162
      %s163 = sphi 0, %s160
      %s164 = sphi 0, %s163
      %s180 = sphi 0, %s164
      %s188 = sphi 0, %s190
      %s191 = sphi 0, %s188
      %s192 = sphi 0, %s191
      %s208 = sphi 0, %s192
    $region4: #{fwd.1} parent=1 // loop_header_branch
      %20 = sbr.rel (%p18) target = $region8
    $region5: #{fwd.1} parent=1 // loop_body
      %s22 = ssub.s32 %s17, 1
      %s23 = ssub.s32 %s17, 2
      %s30 = sadd.s32 1, %s25
      %p31 = scmp.ge.s32.totalorder %s30, 1
      %s32 = scalar_select %p31, 0, %s30
      %s33 = sadd.s32 1, %s24
      %s34 = scalar_select %p31, %s33, %s24
      %p35 = scmp.ge.s32.totalorder %s34, 2
      %s36 = scalar_select %p35, 0, %s34
      %s38 = sadd.s32 %s37, 1
      %p41 = scmp.eq.s32.totalorder %s17, 1
      %p42 = scmp.ne.s32.totalorder %s37, %s39
      %p43 = scmp.eq.s32.totalorder %s17, 0
      %p44 = por %p42, %p43
      %p45 = scmp.ne.s32.totalorder %s37, %s39
      %p46 = scmp.eq.s32.totalorder %s22, 1
      %p47 = por %p45, %p46
      %p48 = scmp.ne.s32.totalorder %s39, %s40
      %p49 = scmp.eq.s32.totalorder %s22, 0
      %p50 = por %p48, %p49
      %p51 = scmp.ne.s32.totalorder %s39, %s40
      %p52 = scmp.eq.s32.totalorder %s23, 1
      %p53 = por %p51, %p52
      %p55 = scmp.ne.s32.totalorder %s40, %s54
      %p56 = scmp.eq.s32.totalorder %s23, 0
      %p57 = por %p55, %p56
      %s58 = ssub.s32 %s24, %s36
      %s59 = ssub.s32 %s25, %s32
      %s60 = sor.u32 %s58, %s59
      %p61 = scmp.eq.s32.totalorder %s60, 0
      %s63 = sadd.s32 %s62, 1
      %s64 = scalar_select %p61, %s62, %s63
      %p67 = pneg %p61
      %p68 = scmp.eq.s32.totalorder %s17, 1
      %p69 = por %p67, %p68
      %p70 = scmp.ne.s32.totalorder %s62, %s65
      %p71 = scmp.eq.s32.totalorder %s17, 0
      %p72 = por %p70, %p71
      %p73 = scmp.ne.s32.totalorder %s62, %s65
      %p74 = scmp.eq.s32.totalorder %s22, 1
      %p75 = por %p73, %p74
      %p76 = scmp.ne.s32.totalorder %s65, %s66
      %p77 = scmp.eq.s32.totalorder %s22, 0
      %p78 = por %p76, %p77
      %p79 = scmp.ne.s32.totalorder %s65, %s66
      %p80 = scmp.eq.s32.totalorder %s23, 1
      %p81 = por %p79, %p80
      %p83 = scmp.ne.s32.totalorder %s66, %s82
      %p84 = scmp.eq.s32.totalorder %s23, 0
      %p85 = por %p83, %p84
      %s87 = sadd.s32 %s86, 1
      %p90 = scmp.eq.s32.totalorder %s17, 1
      %p91 = scmp.ne.s32.totalorder %s86, %s88
      %p92 = scmp.eq.s32.totalorder %s17, 0
      %p93 = por %p91, %p92
      %p94 = scmp.ne.s32.totalorder %s86, %s88
      %p95 = scmp.eq.s32.totalorder %s22, 1
      %p96 = por %p94, %p95
      %p97 = scmp.ne.s32.totalorder %s88, %s89
      %p98 = scmp.eq.s32.totalorder %s22, 0
      %p99 = por %p97, %p98
      %p100 = scmp.ne.s32.totalorder %s88, %s89
      %p101 = scmp.eq.s32.totalorder %s23, 1
      %p102 = por %p100, %p101
      %p104 = scmp.ne.s32.totalorder %s89, %s103
      %p105 = scmp.eq.s32.totalorder %s23, 0
      %p106 = por %p104, %p105
      %s107 = ssub.s32 %s24, %s36
      %s108 = ssub.s32 %s25, %s32
      %s109 = sor.u32 %s107, %s108
      %p110 = scmp.eq.s32.totalorder %s109, 0
      %s112 = sadd.s32 %s111, 1
      %s113 = scalar_select %p110, %s111, %s112
      %p116 = pneg %p110
      %p117 = scmp.eq.s32.totalorder %s17, 1
      %p118 = por %p116, %p117
      %p119 = scmp.ne.s32.totalorder %s111, %s114
      %p120 = scmp.eq.s32.totalorder %s17, 0
      %p121 = por %p119, %p120
      %p122 = scmp.ne.s32.totalorder %s111, %s114
      %p123 = scmp.eq.s32.totalorder %s22, 1
      %p124 = por %p122, %p123
      %p125 = scmp.ne.s32.totalorder %s114, %s115
      %p126 = scmp.eq.s32.totalorder %s22, 0
      %p127 = por %p125, %p126
      %p128 = scmp.ne.s32.totalorder %s114, %s115
      %p129 = scmp.eq.s32.totalorder %s23, 1
      %p130 = por %p128, %p129
      %p132 = scmp.ne.s32.totalorder %s115, %s131
      %p133 = scmp.eq.s32.totalorder %s23, 0
      %p134 = por %p132, %p133
      %s136 = sadd.s32 %s135, 1
      %p139 = scmp.eq.s32.totalorder %s17, 1
      %p140 = scmp.ne.s32.totalorder %s135, %s137
      %p141 = scmp.eq.s32.totalorder %s17, 0
      %p142 = por %p140, %p141
      %p143 = scmp.ne.s32.totalorder %s135, %s137
      %p144 = scmp.eq.s32.totalorder %s22, 1
      %p145 = por %p143, %p144
      %p146 = scmp.ne.s32.totalorder %s137, %s138
      %p147 = scmp.eq.s32.totalorder %s22, 0
      %p148 = por %p146, %p147
      %p149 = scmp.ne.s32.totalorder %s137, %s138
      %p150 = scmp.eq.s32.totalorder %s23, 1
      %p151 = por %p149, %p150
      %p153 = scmp.ne.s32.totalorder %s138, %s152
      %p154 = scmp.eq.s32.totalorder %s23, 0
      %p155 = por %p153, %p154
      %s156 = ssub.s32 %s24, %s36
      %s157 = ssub.s32 %s25, %s32
      %s158 = sor.u32 %s156, %s157
      %p159 = scmp.eq.s32.totalorder %s158, 0
      %s161 = sadd.s32 %s160, 1
      %s162 = scalar_select %p159, %s160, %s161
      %p165 = pneg %p159
      %p166 = scmp.eq.s32.totalorder %s17, 1
      %p167 = por %p165, %p166
      %p168 = scmp.ne.s32.totalorder %s160, %s163
      %p169 = scmp.eq.s32.totalorder %s17, 0
      %p170 = por %p168, %p169
      %p171 = scmp.ne.s32.totalorder %s160, %s163
      %p172 = scmp.eq.s32.totalorder %s22, 1
      %p173 = por %p171, %p172
      %p174 = scmp.ne.s32.totalorder %s163, %s164
      %p175 = scmp.eq.s32.totalorder %s22, 0
      %p176 = por %p174, %p175
      %p177 = scmp.ne.s32.totalorder %s163, %s164
      %p178 = scmp.eq.s32.totalorder %s23, 1
      %p179 = por %p177, %p178
      %p181 = scmp.ne.s32.totalorder %s164, %s180
      %p182 = scmp.eq.s32.totalorder %s23, 0
      %p183 = por %p181, %p182
      %s184 = ssub.s32 %s24, %s36
      %s185 = ssub.s32 %s25, %s32
      %s186 = sor.u32 %s184, %s185
      %p187 = scmp.eq.s32.totalorder %s186, 0
      %s189 = sadd.s32 %s188, 1
      %s190 = scalar_select %p187, %s188, %s189
      %p193 = pneg %p187
      %p194 = scmp.eq.s32.totalorder %s17, 1
      %p195 = por %p193, %p194
      %p196 = scmp.ne.s32.totalorder %s188, %s191
      %p197 = scmp.eq.s32.totalorder %s17, 0
      %p198 = por %p196, %p197
      %p199 = scmp.ne.s32.totalorder %s188, %s191
      %p200 = scmp.eq.s32.totalorder %s22, 1
      %p201 = por %p199, %p200
      %p202 = scmp.ne.s32.totalorder %s191, %s192
      %p203 = scmp.eq.s32.totalorder %s22, 0
      %p204 = por %p202, %p203
      %p205 = scmp.ne.s32.totalorder %s191, %s192
      %p206 = scmp.eq.s32.totalorder %s23, 1
      %p207 = por %p205, %p206
      %p209 = scmp.ne.s32.totalorder %s192, %s208
      %p210 = scmp.eq.s32.totalorder %s23, 0
      %p211 = por %p209, %p210
      %p212 = scmp.le.s32.totalorder 1, %s17
      %p213 = scmp.lt.s32.totalorder %s17, 3
      %p214 = pnand %p212, %p213
      %p215 = pneg %p214
      // Predicated region
      $region9: #{fwd.1} parent=5 // pred_check
        _
      $region10: #{fwd.1} parent=5 // pred_check_branch
        %217 = sbr.rel (%p214) target = $region12
      $region11: #{fwd.1} parent=5 // pred_region
        %s218 = ssub.s32 %s17, 1
        // Predicated region
        $region13: #{fwd.1} parent=11 // pred_check
          %p219 = pneg %p50
        $region14: #{fwd.1} parent=11 // pred_check_branch
          %221 = sbr.rel (%p219) target = $region16
        $region15: #{fwd.1} parent=11 // pred_region
          %s223 = ssub.s32 16, 16
          %224 = vsyncadd [#allocation4], %s223
          %s226 = sshll.u32 %s0, 4
          %s227 = int_to_ptr.vmem [resolvable:$true] %s226
          %229 = dma.vmem_to_smem %s227, 16, [#allocation2], [#allocation4]
        $region16: #{fwd.1} parent=11 // pred_fallthru
          _
        // Predicated region
        $region17: #{fwd.1} parent=11 // pred_check
          %p230 = pneg %p99
        $region18: #{fwd.1} parent=11 // pred_check_branch
          %232 = sbr.rel (%p230) target = $region20
        $region19: #{fwd.1} parent=11 // pred_region
          _
        $region20: #{fwd.1} parent=11 // pred_fallthru
          _
        // Predicated region
        $region21: #{fwd.1} parent=11 // pred_check
          %p233 = pneg %p148
        $region22: #{fwd.1} parent=11 // pred_check_branch
          %235 = sbr.rel (%p233) target = $region24
        $region23: #{fwd.1} parent=11 // pred_region
          _
        $region24: #{fwd.1} parent=11 // pred_fallthru
          _
      $region12: #{fwd.1} parent=5 // pred_fallthru
        _
      %p236 = scmp.lt.s32.totalorder %s17, 2
      // Predicated region
      $region25: #{fwd.1} parent=5 // pred_check
        %p237 = pneg %p236
      $region26: #{fwd.1} parent=5 // pred_check_branch
        %239 = sbr.rel (%p237) target = $region28
      $region27: #{fwd.1} parent=5 // pred_region
        // Predicated region
        $region29: #{fwd.1} parent=27 // pred_check
          %p240 = pneg %p72
        $region30: #{fwd.1} parent=27 // pred_check_branch
          %242 = sbr.rel (%p240) target = $region32
        $region31: #{fwd.1} parent=27 // pred_region
          %s243 = smul.u32 32, %s25
          %p244 = scmp.lt.s32.totalorder %s24, 1
          %s245 = scalar_select %p244, %s24, 1
          %p246 = scmp.lt.s32.totalorder %s243, 31
          %s247 = scalar_select %p246, %s243, 31
          %s248 = smul.addr %s245, 32
          %s249 = sadd.s32 %s247, %s248
          %s250 = smul.addr %s249, 4
          %s251 = scalar_lea.vmem %s1, %s250
          %s252 = smul.u32 32, %s25
        $region32: #{fwd.1} parent=27 // pred_fallthru
          _
        // Predicated region
        $region33: #{fwd.1} parent=27 // pred_check
          %p253 = pneg %p121
        $region34: #{fwd.1} parent=27 // pred_check_branch
          %255 = sbr.rel (%p253) target = $region36
        $region35: #{fwd.1} parent=27 // pred_region
          %s256 = smul.u32 8, %s25
          %p257 = scmp.lt.s32.totalorder %s24, 1
          %s258 = scalar_select %p257, %s24, 1
          %p259 = scmp.lt.s32.totalorder %s256, 7
          %s260 = scalar_select %p259, %s256, 7
          %s261 = smul.addr %s258, 8
          %s262 = sadd.s32 %s260, %s261
          %s263 = smul.addr %s262, 4
          %s264 = scalar_lea.vmem %s3, %s263
          %s265 = smul.u32 8, %s25
        $region36: #{fwd.1} parent=27 // pred_fallthru
          _
      $region28: #{fwd.1} parent=5 // pred_fallthru
        _
      %p266 = scmp.le.s32.totalorder 1, %s17
      %p267 = scmp.lt.s32.totalorder %s17, 3
      %p268 = pnand %p266, %p267
      %p269 = pneg %p268
      // Predicated region
      $region37: #{fwd.1} parent=5 // pred_check
        _
      $region38: #{fwd.1} parent=5 // pred_check_branch
        %271 = sbr.rel (%p268) target = $region40
      $region39: #{fwd.1} parent=5 // pred_region
        %s272 = ssub.s32 %s17, 1
        // Predicated region
        $region41: #{fwd.1} parent=39 // pred_check
          %p273 = pneg %p50
        $region42: #{fwd.1} parent=39 // pred_check_branch
          %275 = sbr.rel (%p273) target = $region44
        $region43: #{fwd.1} parent=39 // pred_region
          %276 = dma.done [#allocation4], 16
        $region44: #{fwd.1} parent=39 // pred_fallthru
          _
        %277 = sfence
        %p278 = pneg %p50
        %p279 = pneg %p47
        %s280 = smul.u32 32, %s27
        %p281 = scmp.lt.s32.totalorder %s26, 1
        %s282 = scalar_select %p281, %s26, 1
        %p283 = scmp.lt.s32.totalorder %s280, 31
        %s284 = scalar_select %p283, %s280, 31
        %s285 = smul.addr %s282, 32
        %s286 = sadd.s32 %s284, %s285
        %s287 = smul.addr %s286, 4
        %s288 = scalar_lea.vmem %s1, %s287
        %p289 = pneg %p78
        %p290 = pneg %p75
        %p291 = pneg %p99
        %p292 = pneg %p96
        %s293 = smul.u32 8, %s27
        %p294 = scmp.lt.s32.totalorder %s26, 1
        %s295 = scalar_select %p294, %s26, 1
        %p296 = scmp.lt.s32.totalorder %s293, 7
        %s297 = scalar_select %p296, %s293, 7
        %s298 = smul.addr %s295, 8
        %s299 = sadd.s32 %s297, %s298
        %s300 = smul.addr %s299, 4
        %s301 = scalar_lea.vmem %s3, %s300
        %p302 = pneg %p127
        %p303 = pneg %p124
        %p304 = pneg %p148
        %p305 = pneg %p145
        %p306 = pneg %p176
        %p307 = pneg %p173
        %s308 = smul.u32 32, %s27
        %p309 = scmp.lt.s32.totalorder %s26, 1
        %s310 = scalar_select %p309, %s26, 1
        %p311 = scmp.lt.s32.totalorder %s308, 31
        %s312 = scalar_select %p311, %s308, 31
        %s313 = smul.addr %s310, 32
        %s314 = sadd.s32 %s312, %s313
        %s315 = smul.addr %s314, 4
        %s316 = scalar_lea.vmem %s5, %s315
        %p317 = pneg %p204
        %p318 = pneg %p201
        %s319 = sand.u32 %s191, 1
        %s320 = scalar_lea.sflag [#allocation3], %s319
        %s321 = sand.u32 %s191, 1
        %s322 = smul.addr %s321, 32
        %s323 = scalar_lea.vmem [#allocation5], %s322
        %s324 = smul.u32 32, %s27
        %p325 = scmp.lt.s32.totalorder %s26, 1
        %s326 = scalar_select %p325, %s26, 1
        %p327 = scmp.lt.s32.totalorder %s324, 31
        %s328 = scalar_select %p327, %s324, 31
        %s329 = smul.addr %s326, 32
        %s330 = sadd.s32 %s328, %s329
        %s331 = smul.addr %s330, 4
        %s332 = scalar_lea.vmem %s1, %s331
        %s333 = smul.u32 32, %s27
        %s334 = smul.u32 8, %s27
        %p335 = scmp.lt.s32.totalorder %s26, 1
        %s336 = scalar_select %p335, %s26, 1
        %p337 = scmp.lt.s32.totalorder %s334, 7
        %s338 = scalar_select %p337, %s334, 7
        %s339 = smul.addr %s336, 8
        %s340 = sadd.s32 %s338, %s339
        %s341 = smul.addr %s340, 4
        %s342 = scalar_lea.vmem %s3, %s341
        %s343 = smul.u32 8, %s27
        %s344 = smul.u32 32, %s27
        %p345 = scmp.lt.s32.totalorder %s26, 1
        %s346 = scalar_select %p345, %s26, 1
        %p347 = scmp.lt.s32.totalorder %s344, 31
        %s348 = scalar_select %p347, %s344, 31
        %s349 = smul.addr %s346, 32
        %s350 = sadd.s32 %s348, %s349
        %s351 = smul.addr %s350, 4
        %s352 = scalar_lea.vmem %s5, %s351
        %s353 = smul.u32 32, %s27
        %s354 = smul.u32 8, %s27
        %v356 = vld [vmem:[%s332] sm:$0xf]
        %v357 = vld [vmem:[%s332 + $0x4] sm:$0xf]
        %v358 = vld [vmem:[%s332 + $0x8] sm:$0xf]
        %v359 = vld [vmem:[%s332 + $0xc] sm:$0xf]
        %v360 = vld [vmem:[%s332 + $0x10] sm:$0xf]
        %v361 = vld [vmem:[%s332 + $0x14] sm:$0xf]
        %v362 = vld [vmem:[%s332 + $0x18] sm:$0xf]
        %v363 = vld [vmem:[%s332 + $0x1c] sm:$0xf]
        %v364 = vld [vmem:[%s332 + $0x20] sm:$0xf]
        %v365 = vld [vmem:[%s332 + $0x24] sm:$0xf]
        %v366 = vld [vmem:[%s332 + $0x28] sm:$0xf]
        %v367 = vld [vmem:[%s332 + $0x2c] sm:$0xf]
        %v368 = vld [vmem:[%s332 + $0x30] sm:$0xf]
        %v369 = vld [vmem:[%s332 + $0x34] sm:$0xf]
        %v370 = vld [vmem:[%s332 + $0x38] sm:$0xf]
        %v371 = vld [vmem:[%s332 + $0x3c] sm:$0xf]
        %v372 = vld [vmem:[%s332 + $0x40] sm:$0xf]
        %v373 = vld [vmem:[%s332 + $0x44] sm:$0xf]
        %v374 = vld [vmem:[%s332 + $0x48] sm:$0xf]
        %v375 = vld [vmem:[%s332 + $0x4c] sm:$0xf]
        %v376 = vld [vmem:[%s332 + $0x50] sm:$0xf]
        %v377 = vld [vmem:[%s332 + $0x54] sm:$0xf]
        %v378 = vld [vmem:[%s332 + $0x58] sm:$0xf]
        %v379 = vld [vmem:[%s332 + $0x5c] sm:$0xf]
        %v380 = vld [vmem:[%s332 + $0x60] sm:$0xf]
        %v381 = vld [vmem:[%s332 + $0x64] sm:$0xf]
        %v382 = vld [vmem:[%s332 + $0x68] sm:$0xf]
        %v383 = vld [vmem:[%s332 + $0x6c] sm:$0xf]
        %v384 = vld [vmem:[%s332 + $0x70] sm:$0xf]
        %v385 = vld [vmem:[%s332 + $0x74] sm:$0xf]
        %v386 = vld [vmem:[%s332 + $0x78] sm:$0xf]
        %v387 = vld [vmem:[%s332 + $0x7c] sm:$0xf]
        %v388 = vld [vmem:[%s2] sm:$0xf]
        %v389 = vld [vmem:[%s2 + $0x4] sm:$0xf]
        %v390 = vld [vmem:[%s2 + $0x8] sm:$0xf]
        %v391 = vld [vmem:[%s2 + $0xc] sm:$0xf]
        %v392 = vld [vmem:[%s2 + $0x10] sm:$0x3]
        %v425 = vunpack.c.l.b16 %v356
        %v426 = vunpack.c.l.b16 %v357
        %v427 = vunpack.c.l.b16 %v358
        %v428 = vunpack.c.l.b16 %v359
        %v429 = vunpack.c.l.b16 %v360
        %v430 = vunpack.c.l.b16 %v361
        %v431 = vunpack.c.l.b16 %v362
        %v432 = vunpack.c.l.b16 %v363
        %v433 = vunpack.c.l.b16 %v364
        %v434 = vunpack.c.l.b16 %v365
        %v435 = vunpack.c.l.b16 %v366
        %v436 = vunpack.c.l.b16 %v367
        %v437 = vunpack.c.l.b16 %v368
        %v438 = vunpack.c.l.b16 %v369
        %v439 = vunpack.c.l.b16 %v370
        %v440 = vunpack.c.l.b16 %v371
        %v441 = vunpack.c.l.b16 %v372
        %v442 = vunpack.c.l.b16 %v373
        %v443 = vunpack.c.l.b16 %v374
        %v444 = vunpack.c.l.b16 %v375
        %v445 = vunpack.c.l.b16 %v376
        %v446 = vunpack.c.l.b16 %v377
        %v447 = vunpack.c.l.b16 %v378
        %v448 = vunpack.c.l.b16 %v379
        %v449 = vunpack.c.l.b16 %v380
        %v450 = vunpack.c.l.b16 %v381
        %v451 = vunpack.c.l.b16 %v382
        %v452 = vunpack.c.l.b16 %v383
        %v453 = vunpack.c.l.b16 %v384
        %v454 = vunpack.c.l.b16 %v385
        %v455 = vunpack.c.l.b16 %v386
        %v456 = vunpack.c.l.b16 %v387
        %v457 = vpack.c.b16 %v426, %v425
        %v458 = vpack.c.b16 %v428, %v427
        %v459 = vpack.c.b16 %v430, %v429
        %v460 = vpack.c.b16 %v432, %v431
        %v461 = vpack.c.b16 %v434, %v433
        %v462 = vpack.c.b16 %v436, %v435
        %v463 = vpack.c.b16 %v438, %v437
        %v464 = vpack.c.b16 %v440, %v439
        %v465 = vpack.c.b16 %v442, %v441
        %v466 = vpack.c.b16 %v444, %v443
        %v467 = vpack.c.b16 %v446, %v445
        %v468 = vpack.c.b16 %v448, %v447
        %v469 = vpack.c.b16 %v450, %v449
        %v470 = vpack.c.b16 %v452, %v451
        %v471 = vpack.c.b16 %v454, %v453
        %v472 = vpack.c.b16 %v456, %v455
        %v478 = vunpack.c.l.b16 %v388
        %v479 = vunpack.c.l.b16 %v389
        %v480 = vunpack.c.l.b16 %v390
        %v481 = vunpack.c.l.b16 %v391
        %v482 = vunpack.c.l.b16 %v392
        %v483 = vpack.c.b16 %v479, %v478
        %v484 = vpack.c.b16 %v481, %v480
        %v485 = vpack.c.b16 %v482, %v482
        %vm488 = vcmask 293888
        %v490 = vsel %vm488, %v457, 0
        %v493 = vsel %vm488, %v458, 0
        %v496 = vsel %vm488, %v459, 0
        %v499 = vsel %vm488, %v460, 0
        %v502 = vsel %vm488, %v461, 0
        %v505 = vsel %vm488, %v462, 0
        %v508 = vsel %vm488, %v463, 0
        %v511 = vsel %vm488, %v464, 0
        %v514 = vsel %vm488, %v465, 0
        %v517 = vsel %vm488, %v466, 0
        %v520 = vsel %vm488, %v467, 0
        %v523 = vsel %vm488, %v468, 0
        %v526 = vsel %vm488, %v469, 0
        %v529 = vsel %vm488, %v470, 0
        %v532 = vsel %vm488, %v471, 0
        %v535 = vsel %vm488, %v472, 0
        %vm537 = vcmask 1041408
        %v539 = vsel %vm537, %v485, 0
        %541 = vmatprep.subr.bf16.mxu0 0
        %542 = vmatpush1.bf16.msra.mxu0 %v483
        %543 = vmatprep.subr.bf16.mxu0 0
        %544 = vmatpush1.bf16.msra.mxu0 %v484
        %545 = vmatprep.subr.bf16.mxu0 0
        %546 = vmatpush1.bf16.msra.mxu0 %v539
        %547 = vmatprep.subr.bf16.mxu0 0
        %548 = vmatpush1.bf16.msra.mxu0 0
        %549 = vmatprep.subr.bf16.mxu0 0
        %550 = vmatpush1.bf16.msra.mxu0 0
        %551 = vmatprep.subr.bf16.mxu0 0
        %552 = vmatpush1.bf16.msra.mxu0 0
        %553 = vmatprep.subr.bf16.mxu0 0
        %554 = vmatpush1.bf16.msra.mxu0 0
        %555 = vmatprep.subr.bf16.mxu0 0
        %556 = vmatpush1.bf16.msra.mxu0 0
        %557 = vmatprep.subr.bf16.mxu0 0
        %558 = vmatpush1.bf16.msra.mxu0 0
        %559 = vmatprep.subr.bf16.mxu0 0
        %560 = vmatpush1.bf16.msra.mxu0 0
        %561 = vmatprep.subr.bf16.mxu0 0
        %562 = vmatpush1.bf16.msra.mxu0 0
        %563 = vmatprep.subr.bf16.mxu0 0
        %564 = vmatpush1.bf16.msra.mxu0 0
        %565 = vmatprep.subr.bf16.mxu0 0
        %566 = vmatpush1.bf16.msra.mxu0 0
        %567 = vmatprep.subr.bf16.mxu0 0
        %568 = vmatpush1.bf16.msra.mxu0 0
        %569 = vmatprep.subr.bf16.mxu0 0
        %570 = vmatpush1.bf16.msra.mxu0 0
        %571 = vmatprep.subr.bf16.mxu0 0
        %572 = vmatpush1.bf16.msra.mxu0 0
        %573 = vmatprep.mubr.bf16.mxu0 0
        %574 = vmatmul.mubr.bf16.gmra.mrb[0].mxu0 %v490
        %v575 = vpop.f32.mrb[0].mxu0
        %v576 = vadd.f32 0.0, %v575
        %v577 = vpop.f32.mrb[0].mxu0
        %v578 = vpop.f32.mrb[0].mxu0
        %v579 = vadd.f32 0.0, %v578
        %v580 = vpop.f32.mrb[0].mxu0
        %581 = vmatprep.mubr.bf16.mxu0 0
        %582 = vmatmul.mubr.bf16.gmra.mrb[0].mxu0 %v493
        %v583 = vpop.f32.mrb[0].mxu0
        %v584 = vadd.f32 0.0, %v583
        %v585 = vpop.f32.mrb[0].mxu0
        %v586 = vpop.f32.mrb[0].mxu0
        %v587 = vadd.f32 0.0, %v586
        %v588 = vpop.f32.mrb[0].mxu0
        %589 = vmatprep.mubr.bf16.mxu0 0
        %590 = vmatmul.mubr.bf16.gmra.mrb[0].mxu0 %v496
        %v591 = vpop.f32.mrb[0].mxu0
        %v592 = vadd.f32 0.0, %v591
        %v593 = vpop.f32.mrb[0].mxu0
        %v594 = vpop.f32.mrb[0].mxu0
        %v595 = vadd.f32 0.0, %v594
        %v596 = vpop.f32.mrb[0].mxu0
        %597 = vmatprep.mubr.bf16.mxu0 0
        %598 = vmatmul.mubr.bf16.gmra.mrb[0].mxu0 %v499
        %v599 = vpop.f32.mrb[0].mxu0
        %v600 = vadd.f32 0.0, %v599
        %v601 = vpop.f32.mrb[0].mxu0
        %v602 = vpop.f32.mrb[0].mxu0
        %v603 = vadd.f32 0.0, %v602
        %v604 = vpop.f32.mrb[0].mxu0
        %605 = vmatprep.mubr.bf16.mxu0 0
        %606 = vmatmul.mubr.bf16.gmra.mrb[0].mxu0 %v502
        %v607 = vpop.f32.mrb[0].mxu0
        %v608 = vadd.f32 0.0, %v607
        %v609 = vpop.f32.mrb[0].mxu0
        %v610 = vpop.f32.mrb[0].mxu0
        %v611 = vadd.f32 0.0, %v610
        %v612 = vpop.f32.mrb[0].mxu0
        %613 = vmatprep.mubr.bf16.mxu0 0
        %614 = vmatmul.mubr.bf16.gmra.mrb[0].mxu0 %v505
        %v615 = vpop.f32.mrb[0].mxu0
        %v616 = vadd.f32 0.0, %v615
        %v617 = vpop.f32.mrb[0].mxu0
        %v618 = vpop.f32.mrb[0].mxu0
        %v619 = vadd.f32 0.0, %v618
        %v620 = vpop.f32.mrb[0].mxu0
        %621 = vmatprep.mubr.bf16.mxu0 0
        %622 = vmatmul.mubr.bf16.gmra.mrb[0].mxu0 %v508
        %v623 = vpop.f32.mrb[0].mxu0
        %v624 = vadd.f32 0.0, %v623
        %v625 = vpop.f32.mrb[0].mxu0
        %v626 = vpop.f32.mrb[0].mxu0
        %v627 = vadd.f32 0.0, %v626
        %v628 = vpop.f32.mrb[0].mxu0
        %629 = vmatprep.mubr.bf16.mxu0 0
        %630 = vmatmul.mubr.bf16.gmra.mrb[0].mxu0 %v511
        %v631 = vpop.f32.mrb[0].mxu0
        %v632 = vadd.f32 0.0, %v631
        %v633 = vpop.f32.mrb[0].mxu0
        %v634 = vpop.f32.mrb[0].mxu0
        %v635 = vadd.f32 0.0, %v634
        %v636 = vpop.f32.mrb[0].mxu0
        %637 = vmatprep.mubr.bf16.mxu0 0
        %638 = vmatmul.mubr.bf16.gmra.mrb[0].mxu0 %v514
        %v639 = vpop.f32.mrb[0].mxu0
        %v640 = vadd.f32 0.0, %v639
        %v641 = vpop.f32.mrb[0].mxu0
        %v642 = vpop.f32.mrb[0].mxu0
        %v643 = vadd.f32 0.0, %v642
        %v644 = vpop.f32.mrb[0].mxu0
        %645 = vmatprep.mubr.bf16.mxu0 0
        %646 = vmatmul.mubr.bf16.gmra.mrb[0].mxu0 %v517
        %v647 = vpop.f32.mrb[0].mxu0
        %v648 = vadd.f32 0.0, %v647
        %v649 = vpop.f32.mrb[0].mxu0
        %v650 = vpop.f32.mrb[0].mxu0
        %v651 = vadd.f32 0.0, %v650
        %v652 = vpop.f32.mrb[0].mxu0
        %653 = vmatprep.mubr.bf16.mxu0 0
        %654 = vmatmul.mubr.bf16.gmra.mrb[0].mxu0 %v520
        %v655 = vpop.f32.mrb[0].mxu0
        %v656 = vadd.f32 0.0, %v655
        %v657 = vpop.f32.mrb[0].mxu0
        %v658 = vpop.f32.mrb[0].mxu0
        %v659 = vadd.f32 0.0, %v658
        %v660 = vpop.f32.mrb[0].mxu0
        %661 = vmatprep.mubr.bf16.mxu0 0
        %662 = vmatmul.mubr.bf16.gmra.mrb[0].mxu0 %v523
        %v663 = vpop.f32.mrb[0].mxu0
        %v664 = vadd.f32 0.0, %v663
        %v665 = vpop.f32.mrb[0].mxu0
        %v666 = vpop.f32.mrb[0].mxu0
        %v667 = vadd.f32 0.0, %v666
        %v668 = vpop.f32.mrb[0].mxu0
        %669 = vmatprep.mubr.bf16.mxu0 0
        %670 = vmatmul.mubr.bf16.gmra.mrb[0].mxu0 %v526
        %v671 = vpop.f32.mrb[0].mxu0
        %v672 = vadd.f32 0.0, %v671
        %v673 = vpop.f32.mrb[0].mxu0
        %v674 = vpop.f32.mrb[0].mxu0
        %v675 = vadd.f32 0.0, %v674
        %v676 = vpop.f32.mrb[0].mxu0
        %677 = vmatprep.mubr.bf16.mxu0 0
        %678 = vmatmul.mubr.bf16.gmra.mrb[0].mxu0 %v529
        %v679 = vpop.f32.mrb[0].mxu0
        %v680 = vadd.f32 0.0, %v679
        %v681 = vpop.f32.mrb[0].mxu0
        %v682 = vpop.f32.mrb[0].mxu0
        %v683 = vadd.f32 0.0, %v682
        %v684 = vpop.f32.mrb[0].mxu0
        %685 = vmatprep.mubr.bf16.mxu0 0
        %686 = vmatmul.mubr.bf16.gmra.mrb[0].mxu0 %v532
        %v687 = vpop.f32.mrb[0].mxu0
        %v688 = vadd.f32 0.0, %v687
        %v689 = vpop.f32.mrb[0].mxu0
        %v690 = vpop.f32.mrb[0].mxu0
        %v691 = vadd.f32 0.0, %v690
        %v692 = vpop.f32.mrb[0].mxu0
        %693 = vmatprep.mubr.bf16.mxu0 0
        %694 = vmatmul.mubr.bf16.gmra.mrb[0].mxu0 %v535
        %v695 = vpop.f32.mrb[0].mxu0
        %v696 = vadd.f32 0.0, %v695
        %v697 = vpop.f32.mrb[0].mxu0
        %v698 = vpop.f32.mrb[0].mxu0
        %v699 = vadd.f32 0.0, %v698
        %v700 = vpop.f32.mrb[0].mxu0
        %701 = vdwg.mxu0
        %s702 = sld [smem:[#allocation2 + $0x1]]
        %v703 = vmax.f32 %v576, 0.0
        %v704 = vmax.f32 %v579, 0.0
        %v705 = vmax.f32 %v584, 0.0
        %v706 = vmax.f32 %v587, 0.0
        %v707 = vmax.f32 %v592, 0.0
        %v708 = vmax.f32 %v595, 0.0
        %v709 = vmax.f32 %v600, 0.0
        %v710 = vmax.f32 %v603, 0.0
        %v711 = vmax.f32 %v608, 0.0
        %v712 = vmax.f32 %v611, 0.0
        %v713 = vmax.f32 %v616, 0.0
        %v714 = vmax.f32 %v619, 0.0
        %v715 = vmax.f32 %v624, 0.0
        %v716 = vmax.f32 %v627, 0.0
        %v717 = vmax.f32 %v632, 0.0
        %v718 = vmax.f32 %v635, 0.0
        %v719 = vmax.f32 %v640, 0.0
        %v720 = vmax.f32 %v643, 0.0
        %v721 = vmax.f32 %v648, 0.0
        %v722 = vmax.f32 %v651, 0.0
        %v723 = vmax.f32 %v656, 0.0
        %v724 = vmax.f32 %v659, 0.0
        %v725 = vmax.f32 %v664, 0.0
        %v726 = vmax.f32 %v667, 0.0
        %v727 = vmax.f32 %v672, 0.0
        %v728 = vmax.f32 %v675, 0.0
        %v729 = vmax.f32 %v680, 0.0
        %v730 = vmax.f32 %v683, 0.0
        %v731 = vmax.f32 %v688, 0.0
        %v732 = vmax.f32 %v691, 0.0
        %v733 = vmax.f32 %v696, 0.0
        %v734 = vmax.f32 %v699, 0.0
        %v735 = vstv %s702
        %v736 = vmul.f32 %v735, %v703
        %v737 = vmul.f32 %v735, %v704
        %v738 = vmul.f32 %v735, %v705
        %v739 = vmul.f32 %v735, %v706
        %v740 = vmul.f32 %v735, %v707
        %v741 = vmul.f32 %v735, %v708
        %v742 = vmul.f32 %v735, %v709
        %v743 = vmul.f32 %v735, %v710
        %v744 = vmul.f32 %v735, %v711
        %v745 = vmul.f32 %v735, %v712
        %v746 = vmul.f32 %v735, %v713
        %v747 = vmul.f32 %v735, %v714
        %v748 = vmul.f32 %v735, %v715
        %v749 = vmul.f32 %v735, %v716
        %v750 = vmul.f32 %v735, %v717
        %v751 = vmul.f32 %v735, %v718
        %v752 = vmul.f32 %v735, %v719
        %v753 = vmul.f32 %v735, %v720
        %v754 = vmul.f32 %v735, %v721
        %v755 = vmul.f32 %v735, %v722
        %v756 = vmul.f32 %v735, %v723
        %v757 = vmul.f32 %v735, %v724
        %v758 = vmul.f32 %v735, %v725
        %v759 = vmul.f32 %v735, %v726
        %v760 = vmul.f32 %v735, %v727
        %v761 = vmul.f32 %v735, %v728
        %v762 = vmul.f32 %v735, %v729
        %v763 = vmul.f32 %v735, %v730
        %v764 = vmul.f32 %v735, %v731
        %v765 = vmul.f32 %v735, %v732
        %v766 = vmul.f32 %v735, %v733
        %v767 = vmul.f32 %v735, %v734
        %s768 = sld [smem:[#allocation2]]
        %v769 = vstv %s768
        %v770 = vmul.f32 %v769, %v576
        %v771 = vmul.f32 %v769, %v579
        %v772 = vmul.f32 %v769, %v584
        %v773 = vmul.f32 %v769, %v587
        %v774 = vmul.f32 %v769, %v592
        %v775 = vmul.f32 %v769, %v595
        %v776 = vmul.f32 %v769, %v600
        %v777 = vmul.f32 %v769, %v603
        %v778 = vmul.f32 %v769, %v608
        %v779 = vmul.f32 %v769, %v611
        %v780 = vmul.f32 %v769, %v616
        %v781 = vmul.f32 %v769, %v619
        %v782 = vmul.f32 %v769, %v624
        %v783 = vmul.f32 %v769, %v627
        %v784 = vmul.f32 %v769, %v632
        %v785 = vmul.f32 %v769, %v635
        %v786 = vmul.f32 %v769, %v640
        %v787 = vmul.f32 %v769, %v643
        %v788 = vmul.f32 %v769, %v648
        %v789 = vmul.f32 %v769, %v651
        %v790 = vmul.f32 %v769, %v656
        %v791 = vmul.f32 %v769, %v659
        %v792 = vmul.f32 %v769, %v664
        %v793 = vmul.f32 %v769, %v667
        %v794 = vmul.f32 %v769, %v672
        %v795 = vmul.f32 %v769, %v675
        %v796 = vmul.f32 %v769, %v680
        %v797 = vmul.f32 %v769, %v683
        %v798 = vmul.f32 %v769, %v688
        %v799 = vmul.f32 %v769, %v691
        %v800 = vmul.f32 %v769, %v696
        %v801 = vmul.f32 %v769, %v699
        %834 = vrot.lane.b32.xlu0 %v770, 124
        %v835 = vpop.permute.xlu0 %834
        %836 = vrot.lane.b32.xlu0 %v771, 124
        %v837 = vpop.permute.xlu0 %836
        %838 = vrot.lane.b32.xlu0 %v772, 124
        %v839 = vpop.permute.xlu0 %838
        %840 = vrot.lane.b32.xlu0 %v773, 124
        %v841 = vpop.permute.xlu0 %840
        %842 = vrot.lane.b32.xlu0 %v774, 124
        %v843 = vpop.permute.xlu0 %842
        %844 = vrot.lane.b32.xlu0 %v775, 124
        %v845 = vpop.permute.xlu0 %844
        %846 = vrot.lane.b32.xlu0 %v776, 124
        %v847 = vpop.permute.xlu0 %846
        %848 = vrot.lane.b32.xlu0 %v777, 124
        %v849 = vpop.permute.xlu0 %848
        %850 = vrot.lane.b32.xlu0 %v778, 124
        %v851 = vpop.permute.xlu0 %850
        %852 = vrot.lane.b32.xlu0 %v779, 124
        %v853 = vpop.permute.xlu0 %852
        %854 = vrot.lane.b32.xlu0 %v780, 124
        %v855 = vpop.permute.xlu0 %854
        %856 = vrot.lane.b32.xlu0 %v781, 124
        %v857 = vpop.permute.xlu0 %856
        %858 = vrot.lane.b32.xlu0 %v782, 124
        %v859 = vpop.permute.xlu0 %858
        %860 = vrot.lane.b32.xlu0 %v783, 124
        %v861 = vpop.permute.xlu0 %860
        %862 = vrot.lane.b32.xlu0 %v784, 124
        %v863 = vpop.permute.xlu0 %862
        %864 = vrot.lane.b32.xlu0 %v785, 124
        %v865 = vpop.permute.xlu0 %864
        %866 = vrot.lane.b32.xlu0 %v786, 124
        %v867 = vpop.permute.xlu0 %866
        %868 = vrot.lane.b32.xlu0 %v787, 124
        %v869 = vpop.permute.xlu0 %868
        %870 = vrot.lane.b32.xlu0 %v788, 124
        %v871 = vpop.permute.xlu0 %870
        %872 = vrot.lane.b32.xlu0 %v789, 124
        %v873 = vpop.permute.xlu0 %872
        %874 = vrot.lane.b32.xlu0 %v790, 124
        %v875 = vpop.permute.xlu0 %874
        %876 = vrot.lane.b32.xlu0 %v791, 124
        %v877 = vpop.permute.xlu0 %876
        %878 = vrot.lane.b32.xlu0 %v792, 124
        %v879 = vpop.permute.xlu0 %878
        %880 = vrot.lane.b32.xlu0 %v793, 124
        %v881 = vpop.permute.xlu0 %880
        %882 = vrot.lane.b32.xlu0 %v794, 124
        %v883 = vpop.permute.xlu0 %882
        %884 = vrot.lane.b32.xlu0 %v795, 124
        %v885 = vpop.permute.xlu0 %884
        %886 = vrot.lane.b32.xlu0 %v796, 124
        %v887 = vpop.permute.xlu0 %886
        %888 = vrot.lane.b32.xlu0 %v797, 124
        %v889 = vpop.permute.xlu0 %888
        %890 = vrot.lane.b32.xlu0 %v798, 124
        %v891 = vpop.permute.xlu0 %890
        %892 = vrot.lane.b32.xlu0 %v799, 124
        %v893 = vpop.permute.xlu0 %892
        %894 = vrot.lane.b32.xlu0 %v800, 124
        %v895 = vpop.permute.xlu0 %894
        %896 = vrot.lane.b32.xlu0 %v801, 124
        %v897 = vpop.permute.xlu0 %896
        %v930 = vadd.f32 %v736, %v835
        %v931 = vadd.f32 %v737, %v837
        %v932 = vadd.f32 %v738, %v839
        %v933 = vadd.f32 %v739, %v841
        %v934 = vadd.f32 %v740, %v843
        %v935 = vadd.f32 %v741, %v845
        %v936 = vadd.f32 %v742, %v847
        %v937 = vadd.f32 %v743, %v849
        %v938 = vadd.f32 %v744, %v851
        %v939 = vadd.f32 %v745, %v853
        %v940 = vadd.f32 %v746, %v855
        %v941 = vadd.f32 %v747, %v857
        %v942 = vadd.f32 %v748, %v859
        %v943 = vadd.f32 %v749, %v861
        %v944 = vadd.f32 %v750, %v863
        %v945 = vadd.f32 %v751, %v865
        %v946 = vadd.f32 %v752, %v867
        %v947 = vadd.f32 %v753, %v869
        %v948 = vadd.f32 %v754, %v871
        %v949 = vadd.f32 %v755, %v873
        %v950 = vadd.f32 %v756, %v875
        %v951 = vadd.f32 %v757, %v877
        %v952 = vadd.f32 %v758, %v879
        %v953 = vadd.f32 %v759, %v881
        %v954 = vadd.f32 %v760, %v883
        %v955 = vadd.f32 %v761, %v885
        %v956 = vadd.f32 %v762, %v887
        %v957 = vadd.f32 %v763, %v889
        %v958 = vadd.f32 %v764, %v891
        %v959 = vadd.f32 %v765, %v893
        %v960 = vadd.f32 %v766, %v895
        %v961 = vadd.f32 %v767, %v897
        %v962 = vpack.c.bf16 %v931, %v930
        %v963 = vpack.c.bf16 %v933, %v932
        %v964 = vpack.c.bf16 %v935, %v934
        %v965 = vpack.c.bf16 %v937, %v936
        %v966 = vpack.c.bf16 %v939, %v938
        %v967 = vpack.c.bf16 %v941, %v940
        %v968 = vpack.c.bf16 %v943, %v942
        %v969 = vpack.c.bf16 %v945, %v944
        %v970 = vpack.c.bf16 %v947, %v946
        %v971 = vpack.c.bf16 %v949, %v948
        %v972 = vpack.c.bf16 %v951, %v950
        %v973 = vpack.c.bf16 %v953, %v952
        %v974 = vpack.c.bf16 %v955, %v954
        %v975 = vpack.c.bf16 %v957, %v956
        %v976 = vpack.c.bf16 %v959, %v958
        %v977 = vpack.c.bf16 %v961, %v960
        %v994 = vunpack.c.l.b16 %v962
        %v995 = vunpack.c.h.b16 %v962
        %v996 = vunpack.c.l.b16 %v963
        %v997 = vunpack.c.h.b16 %v963
        %v998 = vunpack.c.l.b16 %v964
        %v999 = vunpack.c.h.b16 %v964
        %v1000 = vunpack.c.l.b16 %v965
        %v1001 = vunpack.c.h.b16 %v965
        %v1002 = vunpack.c.l.b16 %v966
        %v1003 = vunpack.c.h.b16 %v966
        %v1004 = vunpack.c.l.b16 %v967
        %v1005 = vunpack.c.h.b16 %v967
        %v1006 = vunpack.c.l.b16 %v968
        %v1007 = vunpack.c.h.b16 %v968
        %v1008 = vunpack.c.l.b16 %v969
        %v1009 = vunpack.c.h.b16 %v969
        %v1010 = vunpack.c.l.b16 %v970
        %v1011 = vunpack.c.h.b16 %v970
        %v1012 = vunpack.c.l.b16 %v971
        %v1013 = vunpack.c.h.b16 %v971
        %v1014 = vunpack.c.l.b16 %v972
        %v1015 = vunpack.c.h.b16 %v972
        %v1016 = vunpack.c.l.b16 %v973
        %v1017 = vunpack.c.h.b16 %v973
        %v1018 = vunpack.c.l.b16 %v974
        %v1019 = vunpack.c.h.b16 %v974
        %v1020 = vunpack.c.l.b16 %v975
        %v1021 = vunpack.c.h.b16 %v975
        %v1022 = vunpack.c.l.b16 %v976
        %v1023 = vunpack.c.h.b16 %v976
        %v1024 = vunpack.c.l.b16 %v977
        %v1025 = vunpack.c.h.b16 %v977
        %v1026 = vpack.c.b16 %v994, %v994
        %v1027 = vpack.c.b16 %v995, %v995
        %v1028 = vpack.c.b16 %v996, %v996
        %v1029 = vpack.c.b16 %v997, %v997
        %v1030 = vpack.c.b16 %v998, %v998
        %v1031 = vpack.c.b16 %v999, %v999
        %v1032 = vpack.c.b16 %v1000, %v1000
        %v1033 = vpack.c.b16 %v1001, %v1001
        %v1034 = vpack.c.b16 %v1002, %v1002
        %v1035 = vpack.c.b16 %v1003, %v1003
        %v1036 = vpack.c.b16 %v1004, %v1004
        %v1037 = vpack.c.b16 %v1005, %v1005
        %v1038 = vpack.c.b16 %v1006, %v1006
        %v1039 = vpack.c.b16 %v1007, %v1007
        %v1040 = vpack.c.b16 %v1008, %v1008
        %v1041 = vpack.c.b16 %v1009, %v1009
        %v1042 = vpack.c.b16 %v1010, %v1010
        %v1043 = vpack.c.b16 %v1011, %v1011
        %v1044 = vpack.c.b16 %v1012, %v1012
        %v1045 = vpack.c.b16 %v1013, %v1013
        %v1046 = vpack.c.b16 %v1014, %v1014
        %v1047 = vpack.c.b16 %v1015, %v1015
        %v1048 = vpack.c.b16 %v1016, %v1016
        %v1049 = vpack.c.b16 %v1017, %v1017
        %v1050 = vpack.c.b16 %v1018, %v1018
        %v1051 = vpack.c.b16 %v1019, %v1019
        %v1052 = vpack.c.b16 %v1020, %v1020
        %v1053 = vpack.c.b16 %v1021, %v1021
        %v1054 = vpack.c.b16 %v1022, %v1022
        %v1055 = vpack.c.b16 %v1023, %v1023
        %v1056 = vpack.c.b16 %v1024, %v1024
        %v1057 = vpack.c.b16 %v1025, %v1025
        %vm1090 = vcmask 27648
        %1091 = vst.msk [vmem:[%s352] sm:$0xf] %vm1090, %v1026
        %1092 = vst.msk [vmem:[%s352 + $0x4] sm:$0xf] %vm1090, %v1027
        %1093 = vst.msk [vmem:[%s352 + $0x8] sm:$0xf] %vm1090, %v1028
        %1094 = vst.msk [vmem:[%s352 + $0xc] sm:$0xf] %vm1090, %v1029
        %1095 = vst.msk [vmem:[%s352 + $0x10] sm:$0xf] %vm1090, %v1030
        %1096 = vst.msk [vmem:[%s352 + $0x14] sm:$0xf] %vm1090, %v1031
        %1097 = vst.msk [vmem:[%s352 + $0x18] sm:$0xf] %vm1090, %v1032
        %1098 = vst.msk [vmem:[%s352 + $0x1c] sm:$0xf] %vm1090, %v1033
        %1099 = vst.msk [vmem:[%s352 + $0x20] sm:$0xf] %vm1090, %v1034
        %1100 = vst.msk [vmem:[%s352 + $0x24] sm:$0xf] %vm1090, %v1035
        %1101 = vst.msk [vmem:[%s352 + $0x28] sm:$0xf] %vm1090, %v1036
        %1102 = vst.msk [vmem:[%s352 + $0x2c] sm:$0xf] %vm1090, %v1037
        %1103 = vst.msk [vmem:[%s352 + $0x30] sm:$0xf] %vm1090, %v1038
        %1104 = vst.msk [vmem:[%s352 + $0x34] sm:$0xf] %vm1090, %v1039
        %1105 = vst.msk [vmem:[%s352 + $0x38] sm:$0xf] %vm1090, %v1040
        %1106 = vst.msk [vmem:[%s352 + $0x3c] sm:$0xf] %vm1090, %v1041
        %1107 = vst.msk [vmem:[%s352 + $0x40] sm:$0xf] %vm1090, %v1042
        %1108 = vst.msk [vmem:[%s352 + $0x44] sm:$0xf] %vm1090, %v1043
        %1109 = vst.msk [vmem:[%s352 + $0x48] sm:$0xf] %vm1090, %v1044
        %1110 = vst.msk [vmem:[%s352 + $0x4c] sm:$0xf] %vm1090, %v1045
        %1111 = vst.msk [vmem:[%s352 + $0x50] sm:$0xf] %vm1090, %v1046
        %1112 = vst.msk [vmem:[%s352 + $0x54] sm:$0xf] %vm1090, %v1047
        %1113 = vst.msk [vmem:[%s352 + $0x58] sm:$0xf] %vm1090, %v1048
        %1114 = vst.msk [vmem:[%s352 + $0x5c] sm:$0xf] %vm1090, %v1049
        %1115 = vst.msk [vmem:[%s352 + $0x60] sm:$0xf] %vm1090, %v1050
        %1116 = vst.msk [vmem:[%s352 + $0x64] sm:$0xf] %vm1090, %v1051
        %1117 = vst.msk [vmem:[%s352 + $0x68] sm:$0xf] %vm1090, %v1052
        %1118 = vst.msk [vmem:[%s352 + $0x6c] sm:$0xf] %vm1090, %v1053
        %1119 = vst.msk [vmem:[%s352 + $0x70] sm:$0xf] %vm1090, %v1054
        %1120 = vst.msk [vmem:[%s352 + $0x74] sm:$0xf] %vm1090, %v1055
        %1121 = vst.msk [vmem:[%s352 + $0x78] sm:$0xf] %vm1090, %v1056
        %1122 = vst.msk [vmem:[%s352 + $0x7c] sm:$0xf] %vm1090, %v1057
        %v1123 = vld [vmem:[%s342] sm:$0xf]
        %v1124 = vld [vmem:[%s342 + $0x4] sm:$0xf]
        %v1125 = vld [vmem:[%s342 + $0x8] sm:$0xf]
        %v1126 = vld [vmem:[%s342 + $0xc] sm:$0xf]
        %v1127 = vld [vmem:[%s342 + $0x10] sm:$0xf]
        %v1128 = vld [vmem:[%s342 + $0x14] sm:$0xf]
        %v1129 = vld [vmem:[%s342 + $0x18] sm:$0xf]
        %v1130 = vld [vmem:[%s342 + $0x1c] sm:$0xf]
        %v1131 = vld [vmem:[%s4] sm:$0xf]
        %v1132 = vld [vmem:[%s4 + $0x4] sm:$0xf]
        %v1133 = vld [vmem:[%s4 + $0x8] sm:$0xf]
        %v1134 = vld [vmem:[%s4 + $0xc] sm:$0xf]
        %v1135 = vld [vmem:[%s4 + $0x10] sm:$0x3]
        %v1144 = vunpack.c.l.b16 %v1123
        %v1145 = vunpack.c.l.b16 %v1124
        %v1146 = vunpack.c.l.b16 %v1125
        %v1147 = vunpack.c.l.b16 %v1126
        %v1148 = vunpack.c.l.b16 %v1127
        %v1149 = vunpack.c.l.b16 %v1128
        %v1150 = vunpack.c.l.b16 %v1129
        %v1151 = vunpack.c.l.b16 %v1130
        %v1152 = vpack.c.b16 %v1145, %v1144
        %v1153 = vpack.c.b16 %v1147, %v1146
        %v1154 = vpack.c.b16 %v1149, %v1148
        %v1155 = vpack.c.b16 %v1151, %v1150
        %v1161 = vunpack.c.l.b16 %v1131
        %v1162 = vunpack.c.l.b16 %v1132
        %v1163 = vunpack.c.l.b16 %v1133
        %v1164 = vunpack.c.l.b16 %v1134
        %v1165 = vunpack.c.l.b16 %v1135
        %v1166 = vpack.c.b16 %v1162, %v1161
        %v1167 = vpack.c.b16 %v1164, %v1163
        %v1168 = vpack.c.b16 %v1165, %v1165
        %v1172 = vsel %vm488, %v1152, 0
        %v1175 = vsel %vm488, %v1153, 0
        %v1178 = vsel %vm488, %v1154, 0
        %v1181 = vsel %vm488, %v1155, 0
        %v1184 = vsel %vm537, %v1168, 0
        %1186 = vmatprep.subr.bf16.mxu0 0
        %1187 = vmatpush1.bf16.msra.mxu0 %v1166
        %1188 = vmatprep.subr.bf16.mxu0 0
        %1189 = vmatpush1.bf16.msra.mxu0 %v1167
        %1190 = vmatprep.subr.bf16.mxu0 0
        %1191 = vmatpush1.bf16.msra.mxu0 %v1184
        %1192 = vmatprep.subr.bf16.mxu0 0
        %1193 = vmatpush1.bf16.msra.mxu0 0
        %1194 = vmatprep.subr.bf16.mxu0 0
        %1195 = vmatpush1.bf16.msra.mxu0 0
        %1196 = vmatprep.subr.bf16.mxu0 0
        %1197 = vmatpush1.bf16.msra.mxu0 0
        %1198 = vmatprep.subr.bf16.mxu0 0
        %1199 = vmatpush1.bf16.msra.mxu0 0
        %1200 = vmatprep.subr.bf16.mxu0 0
        %1201 = vmatpush1.bf16.msra.mxu0 0
        %1202 = vmatprep.subr.bf16.mxu0 0
        %1203 = vmatpush1.bf16.msra.mxu0 0
        %1204 = vmatprep.subr.bf16.mxu0 0
        %1205 = vmatpush1.bf16.msra.mxu0 0
        %1206 = vmatprep.subr.bf16.mxu0 0
        %1207 = vmatpush1.bf16.msra.mxu0 0
        %1208 = vmatprep.subr.bf16.mxu0 0
        %1209 = vmatpush1.bf16.msra.mxu0 0
        %1210 = vmatprep.subr.bf16.mxu0 0
        %1211 = vmatpush1.bf16.msra.mxu0 0
        %1212 = vmatprep.subr.bf16.mxu0 0
        %1213 = vmatpush1.bf16.msra.mxu0 0
        %1214 = vmatprep.subr.bf16.mxu0 0
        %1215 = vmatpush1.bf16.msra.mxu0 0
        %1216 = vmatprep.subr.bf16.mxu0 0
        %1217 = vmatpush1.bf16.msra.mxu0 0
        %1218 = vmatprep.mubr.bf16.mxu0 0
        %1219 = vmatmul.mubr.bf16.gmra.mrb[0].mxu0 %v1172
        %v1220 = vpop.f32.mrb[0].mxu0
        %v1221 = vadd.f32 0.0, %v1220
        %v1222 = vpop.f32.mrb[0].mxu0
        %v1223 = vpop.f32.mrb[0].mxu0
        %v1224 = vadd.f32 0.0, %v1223
        %v1225 = vpop.f32.mrb[0].mxu0
        %1226 = vmatprep.mubr.bf16.mxu0 0
        %1227 = vmatmul.mubr.bf16.gmra.mrb[0].mxu0 %v1175
        %v1228 = vpop.f32.mrb[0].mxu0
        %v1229 = vadd.f32 0.0, %v1228
        %v1230 = vpop.f32.mrb[0].mxu0
        %v1231 = vpop.f32.mrb[0].mxu0
        %v1232 = vadd.f32 0.0, %v1231
        %v1233 = vpop.f32.mrb[0].mxu0
        %1234 = vmatprep.mubr.bf16.mxu0 0
        %1235 = vmatmul.mubr.bf16.gmra.mrb[0].mxu0 %v1178
        %v1236 = vpop.f32.mrb[0].mxu0
        %v1237 = vadd.f32 0.0, %v1236
        %v1238 = vpop.f32.mrb[0].mxu0
        %v1239 = vpop.f32.mrb[0].mxu0
        %v1240 = vadd.f32 0.0, %v1239
        %v1241 = vpop.f32.mrb[0].mxu0
        %1242 = vmatprep.mubr.bf16.mxu0 0
        %1243 = vmatmul.mubr.bf16.gmra.mrb[0].mxu0 %v1181
        %v1244 = vpop.f32.mrb[0].mxu0
        %v1245 = vadd.f32 0.0, %v1244
        %v1246 = vpop.f32.mrb[0].mxu0
        %v1247 = vpop.f32.mrb[0].mxu0
        %v1248 = vadd.f32 0.0, %v1247
        %v1249 = vpop.f32.mrb[0].mxu0
        %1250 = vdwg.mxu0
        %s1251 = sld [smem:[#allocation2 + $0x3]]
        %v1252 = vmax.f32 %v1221, 0.0
        %v1253 = vmax.f32 %v1224, 0.0
        %v1254 = vmax.f32 %v1229, 0.0
        %v1255 = vmax.f32 %v1232, 0.0
        %v1256 = vmax.f32 %v1237, 0.0
        %v1257 = vmax.f32 %v1240, 0.0
        %v1258 = vmax.f32 %v1245, 0.0
        %v1259 = vmax.f32 %v1248, 0.0
        %v1260 = vstv %s1251
        %v1261 = vmul.f32 %v1260, %v1252
        %v1262 = vmul.f32 %v1260, %v1253
        %v1263 = vmul.f32 %v1260, %v1254
        %v1264 = vmul.f32 %v1260, %v1255
        %v1265 = vmul.f32 %v1260, %v1256
        %v1266 = vmul.f32 %v1260, %v1257
        %v1267 = vmul.f32 %v1260, %v1258
        %v1268 = vmul.f32 %v1260, %v1259
        %s1269 = sld [smem:[#allocation2 + $0x2]]
        %v1270 = vstv %s1269
        %v1271 = vmul.f32 %v1270, %v1221
        %v1272 = vmul.f32 %v1270, %v1224
        %v1273 = vmul.f32 %v1270, %v1229
        %v1274 = vmul.f32 %v1270, %v1232
        %v1275 = vmul.f32 %v1270, %v1237
        %v1276 = vmul.f32 %v1270, %v1240
        %v1277 = vmul.f32 %v1270, %v1245
        %v1278 = vmul.f32 %v1270, %v1248
        %1287 = vrot.lane.b32.xlu0 %v1271, 120
        %v1288 = vpop.permute.xlu0 %1287
        %1289 = vrot.lane.b32.xlu0 %v1272, 120
        %v1290 = vpop.permute.xlu0 %1289
        %1291 = vrot.lane.b32.xlu0 %v1273, 120
        %v1292 = vpop.permute.xlu0 %1291
        %1293 = vrot.lane.b32.xlu0 %v1274, 120
        %v1294 = vpop.permute.xlu0 %1293
        %1295 = vrot.lane.b32.xlu0 %v1275, 120
        %v1296 = vpop.permute.xlu0 %1295
        %1297 = vrot.lane.b32.xlu0 %v1276, 120
        %v1298 = vpop.permute.xlu0 %1297
        %1299 = vrot.lane.b32.xlu0 %v1277, 120
        %v1300 = vpop.permute.xlu0 %1299
        %1301 = vrot.lane.b32.xlu0 %v1278, 120
        %v1302 = vpop.permute.xlu0 %1301
        %v1311 = vadd.f32 %v1261, %v1288
        %v1312 = vadd.f32 %v1262, %v1290
        %v1313 = vadd.f32 %v1263, %v1292
        %v1314 = vadd.f32 %v1264, %v1294
        %v1315 = vadd.f32 %v1265, %v1296
        %v1316 = vadd.f32 %v1266, %v1298
        %v1317 = vadd.f32 %v1267, %v1300
        %v1318 = vadd.f32 %v1268, %v1302
        %v1319 = vpack.c.bf16 %v1312, %v1311
        %v1320 = vpack.c.bf16 %v1314, %v1313
        %v1321 = vpack.c.bf16 %v1316, %v1315
        %v1322 = vpack.c.bf16 %v1318, %v1317
        %v1327 = vunpack.c.l.b16 %v1319
        %v1328 = vunpack.c.h.b16 %v1319
        %v1329 = vunpack.c.l.b16 %v1320
        %v1330 = vunpack.c.h.b16 %v1320
        %v1331 = vunpack.c.l.b16 %v1321
        %v1332 = vunpack.c.h.b16 %v1321
        %v1333 = vunpack.c.l.b16 %v1322
        %v1334 = vunpack.c.h.b16 %v1322
        %v1335 = vpack.c.b16 %v1327, %v1327
        %v1336 = vpack.c.b16 %v1328, %v1328
        %v1337 = vpack.c.b16 %v1329, %v1329
        %v1338 = vpack.c.b16 %v1330, %v1330
        %v1339 = vpack.c.b16 %v1331, %v1331
        %v1340 = vpack.c.b16 %v1332, %v1332
        %v1341 = vpack.c.b16 %v1333, %v1333
        %v1342 = vpack.c.b16 %v1334, %v1334
        %vm1351 = vcmask 60416
        %1352 = vst.msk [vmem:[%s323] sm:$0xf] %vm1351, %v1335
        %1353 = vst.msk [vmem:[%s323 + $0x4] sm:$0xf] %vm1351, %v1336
        %1354 = vst.msk [vmem:[%s323 + $0x8] sm:$0xf] %vm1351, %v1337
        %1355 = vst.msk [vmem:[%s323 + $0xc] sm:$0xf] %vm1351, %v1338
        %1356 = vst.msk [vmem:[%s323 + $0x10] sm:$0xf] %vm1351, %v1339
        %1357 = vst.msk [vmem:[%s323 + $0x14] sm:$0xf] %vm1351, %v1340
        %1358 = vst.msk [vmem:[%s323 + $0x18] sm:$0xf] %vm1351, %v1341
        %1359 = vst.msk [vmem:[%s323 + $0x1c] sm:$0xf] %vm1351, %v1342
        %s1360 = smul.u32 32, %s27
        %p1361 = scmp.lt.s32.totalorder %s26, 1
        %s1362 = scalar_select %p1361, %s26, 1
        %p1363 = scmp.lt.s32.totalorder %s1360, 31
        %s1364 = scalar_select %p1363, %s1360, 31
        %s1365 = smul.addr %s1362, 32
        %s1366 = sadd.s32 %s1364, %s1365
        %s1367 = smul.addr %s1366, 4
        %s1368 = scalar_lea.vmem %s5, %s1367
        %s1369 = sand.u32 %s191, 1
        %s1370 = scalar_lea.sflag [#allocation3], %s1369
        %s1371 = sand.u32 %s191, 1
        %s1372 = smul.addr %s1371, 32
        %s1373 = scalar_lea.vmem [#allocation5], %s1372
        // Predicated region
        $region45: #{fwd.1} parent=39 // pred_check
          %p1374 = pneg %p173
        $region46: #{fwd.1} parent=39 // pred_check_branch
          %1376 = sbr.rel (%p1374) target = $region48
        $region47: #{fwd.1} parent=39 // pred_region
          %s1377 = smul.u32 32, %s27
        $region48: #{fwd.1} parent=39 // pred_fallthru
          _
        // Predicated region
        $region49: #{fwd.1} parent=39 // pred_check
          %p1378 = pneg %p201
        $region50: #{fwd.1} parent=39 // pred_check_branch
          %1380 = sbr.rel (%p1378) target = $region52
        $region51: #{fwd.1} parent=39 // pred_region
          %s1381 = smul.u32 8, %s27
          %s1383 = ssub.s32 512, 512
          %1384 = vsyncadd %s1370, %s1383
          %s1385 = smul.addr %s26, 8
          %s1386 = sadd.s32 %s1381, %s1385
          %s1387 = smul.addr %s1386, 64
          %s1388 = scalar_lea.hbm %s6, %s1387
          %s1389 = sshll.u32 %s1373, 4
          %s1390 = int_to_ptr.vmem [resolvable:$true] %s1389
          %1395 = dma.vmem_to_hbm [thread:$0]  %s1390, 512, %s1388, %s1370, 64, 64, 4
        $region52: #{fwd.1} parent=39 // pred_fallthru
          _
      $region40: #{fwd.1} parent=5 // pred_fallthru
        _
      %p1396 = scmp.le.s32.totalorder 2, %s17
      // Predicated region
      $region53: #{fwd.1} parent=5 // pred_check
        %p1397 = pneg %p1396
      $region54: #{fwd.1} parent=5 // pred_check_branch
        %1399 = sbr.rel (%p1397) target = $region56
      $region55: #{fwd.1} parent=5 // pred_region
        %s1400 = ssub.s32 %s17, 2
        // Predicated region
        $region57: #{fwd.1} parent=55 // pred_check
          %p1401 = pneg %p179
        $region58: #{fwd.1} parent=55 // pred_check_branch
          %1403 = sbr.rel (%p1401) target = $region60
        $region59: #{fwd.1} parent=55 // pred_region
          %s1404 = smul.u32 32, %s29
          %p1405 = scmp.lt.s32.totalorder %s28, 1
          %s1406 = scalar_select %p1405, %s28, 1
          %p1407 = scmp.lt.s32.totalorder %s1404, 31
          %s1408 = scalar_select %p1407, %s1404, 31
          %s1409 = smul.addr %s1406, 32
          %s1410 = sadd.s32 %s1408, %s1409
          %s1411 = smul.addr %s1410, 4
          %s1412 = scalar_lea.vmem %s5, %s1411
        $region60: #{fwd.1} parent=55 // pred_fallthru
          _
        // Predicated region
        $region61: #{fwd.1} parent=55 // pred_check
          %p1413 = pneg %p207
        $region62: #{fwd.1} parent=55 // pred_check_branch
          %1415 = sbr.rel (%p1413) target = $region64
        $region63: #{fwd.1} parent=55 // pred_region
          %s1416 = sand.u32 %s192, 1
          %s1417 = scalar_lea.sflag [#allocation3], %s1416
          %s1418 = sand.u32 %s192, 1
          %s1419 = smul.addr %s1418, 32
          %s1420 = scalar_lea.vmem [#allocation5], %s1419
          %1421 = dma.done %s1417, 512
        $region64: #{fwd.1} parent=55 // pred_fallthru
          _
      $region56: #{fwd.1} parent=5 // pred_fallthru
        _
    $region6: #{fwd.1} parent=1 // loop_footer
      %s21 = sadd.s32 1, %s17
    $region7: #{fwd.1} parent=1 // loop_footer_branch
      %16 = sbr.rel target = $region3
    $region8: #{fwd.1} parent=1 // loop_exit
      _
    %1422 = vsyncpa [#allocation3], 1
    %s1423 = scalar_lea.sflag [#allocation3], 1
    %1424 = vsyncpa %s1423, 1
    %1425 = vsyncpa [#allocation4], 1
    %s1426 = scalar_lea.sflag [#allocation4], 1
    %1427 = vsyncpa %s1426, 1

</llo_original>
